<compile_context>
chip_gen: v7x
topology: tpu7x:2x2x1
jax: 0.10.0
libtpu: 0.0.40
codegen_flags: <defaults>
</compile_context>

<pallas_src>
import jax
import jax.numpy as jnp
from jax.experimental import pallas as pl


def _round_up(n: int, m: int) -> int:
    return ((n + m - 1) // m) * m


def rnn_kernel(xw_ref, whh_ref, wph_ref, bp_ref, out_ref):
    """Whole recurrence + final projection in one invocation.

    xw_ref  : (T, B, H_pad)  time-major pre-projected inputs (x @ w_hx + b_h)
    whh_ref : (H_pad, H_pad)
    wph_ref : (H_pad, C)
    bp_ref  : (1, C)
    out_ref : (B, C)
    """
    T = xw_ref.shape[0]

    # t = 0: h_0 is zeros, so h_1 = tanh(xw[0]) -- the matmul is skipped entirely.
    h = jnp.tanh(xw_ref[0])

    # Fully unrolled recurrence (T is small & static); per step only
    # h @ w_hh + add + tanh sits on the serial path.  w_hh is re-sliced from the ref
    # each step: VMEM reloads are cheap (3 vld/cycle) and this keeps live ranges short.
    # TODO(synk): once the kernel itself dominates wall time, hold w_hh in the MXU
    # weight-staging registers via pltpu.matmul_push_rhs / matmul_acc_lhs so each
    # serial step streams only the B-row LHS instead of the full 128x128 RHS.
    for t in range(1, T):
        h = jnp.tanh(
            xw_ref[t]
            + jnp.dot(h, whh_ref[...], preferred_element_type=jnp.float32)
        )

    # Only the last timestep's projection is returned by the torch module.
    out_ref[...] = (
        jnp.dot(h, wph_ref[...], preferred_element_type=jnp.float32) + bp_ref[...]
    ).astype(out_ref.dtype)


def prepare_params(w_hx, w_hh, w_ph, b_h, b_p):
    """One-time (init-time) padding of parameters to MXU-friendly shapes.

    Only the contraction dim H is padded to a multiple of 128 (lane); D, C and the
    batch stay unpadded.  Padded rows/cols are zero, which is exact for the forward
    (tanh(0) = 0, zero weight rows/cols contribute nothing to real outputs).
    Hoisted off the per-call path per the perf review.
    """
    D, H = w_hx.shape
    C = w_ph.shape[1]
    H_pad = _round_up(H, 128)

    w_hx_p = jnp.zeros((D, H_pad), jnp.float32).at[:, :H].set(w_hx)
    w_hh_p = jnp.zeros((H_pad, H_pad), jnp.float32).at[:H, :H].set(w_hh)
    w_ph_p = jnp.zeros((H_pad, C), jnp.float32).at[:H, :].set(w_ph)
    b_h_p = jnp.zeros((H_pad,), jnp.float32).at[:H].set(b_h)
    b_p_p = jnp.reshape(b_p.astype(jnp.float32), (1, C))
    # TODO(synk): on v6e/v7x, cast weights (and xw) to bf16 here while keeping f32
    # accumulation in the kernel (~3x fewer MXU passes); requires loosening the 1e-5
    # tolerance vs. the f32 reference.  Keep f32 on v5e (no bf16 VPU/EUP path).
    return w_hx_p, w_hh_p, w_ph_p, b_h_p, b_p_p


@jax.jit
def vanilla_rnn_forward(x, w_hx_p, w_hh_p, w_ph_p, b_h_p, b_p_p):
    """x: (batch, seq, input_dim) float32.  Returns p_T: (batch, num_classes) float32."""
    B, T, D = x.shape
    C = w_ph_p.shape[1]

    # Input projection for ALL timesteps as ONE fused XLA matmul (+ bias), time-major
    # so the kernel can index the leading axis per step.  No 32x-inflated padded-x
    # buffer, no separate transpose/pad ops on the per-call path; b_h added exactly
    # once here (and never in the kernel).
    xw = jnp.einsum("btd,dh->tbh", x.astype(jnp.float32), w_hx_p) + b_h_p  # (T,B,H_pad)

    # Gridless call: every operand lives whole-array in VMEM for the whole kernel, so
    # there is zero per-step pipeline overhead and no redundant weight re-DMA.
    # Budget re-derived against the smallest per-TC VMEM (v7x: 64 MiB), half as margin.
    resident_bytes = 4 * (xw.size + w_hh_p.size + w_ph_p.size + b_p_p.size + B * C)
    assert resident_bytes < 32 * 1024 * 1024, (
        "resident set exceeds the gridless VMEM budget; fall back to a time-chunked "
        "grid / manual DMA of xw chunks"
    )  # TODO(synk): implement the time-chunked fallback if shapes ever scale up.

    return pl.pallas_call(
        rnn_kernel,
        out_shape=jax.ShapeDtypeStruct((B, C), jnp.float32),
    )(xw, w_hh_p, w_ph_p, b_p_p)


def _reference_forward(x, w_hx, w_hh, w_ph, b_h, b_p):
    """Pure-JAX reference mirroring the torch loop (unpadded)."""
    B, T, D = x.shape
    H = w_hx.shape[1]
    h = jnp.zeros((B, H), jnp.float32)
    p = None
    for t in range(T):
        h = jnp.tanh(x[:, t, :] @ w_hx + h @ w_hh + b_h)
        p = h @ w_ph + b_p
    return p


if __name__ == "__main__":
    # Small shapes implied by the module's forward: (batch, seq, input_dim)
    batch_size, seq_length, input_dim = 2, 8, 4
    num_hidden, num_classes = 32, 10

    key = jax.random.PRNGKey(0)
    k_x, k_hx, k_hh, k_ph = jax.random.split(key, 4)

    # Deterministic kaiming-normal-style init (std = sqrt(2 / fan), as in torch).
    w_hx = jax.random.normal(k_hx, (input_dim, num_hidden), jnp.float32) * jnp.sqrt(2.0 / num_hidden)
    w_hh = jax.random.normal(k_hh, (num_hidden, num_hidden), jnp.float32) * jnp.sqrt(2.0 / num_hidden)
    w_ph = jax.random.normal(k_ph, (num_hidden, num_classes), jnp.float32) * jnp.sqrt(2.0 / num_classes)
    b_h = jnp.zeros((num_hidden,), jnp.float32)
    b_p = jnp.zeros((num_classes,), jnp.float32)

    x = jax.random.normal(k_x, (batch_size, seq_length, input_dim), jnp.float32)

    # Padding hoisted off the hot path: done once at "parameter init" time.
    params_padded = prepare_params(w_hx, w_hh, w_ph, b_h, b_p)
    params_padded = jax.block_until_ready(params_padded)

    out = vanilla_rnn_forward(x, *params_padded)
    out = jax.block_until_ready(out)

    ref = _reference_forward(x, w_hx, w_hh, w_ph, b_h, b_p)
    assert out.shape == (batch_size, num_classes)
    assert jnp.allclose(out, ref, atol=1e-5, rtol=1e-5), "mismatch vs reference"

    print("KERNEL_OK")
</pallas_src>

<mosaic_0001>
module attributes {stable_mosaic.version = 11 : i64} {
  func.func @rnn_kernel(%arg0: memref<8x2x128xf32, #tpu.memory_space<vmem>>, %arg1: memref<128x128xf32, #tpu.memory_space<vmem>>, %arg2: memref<128x10xf32, #tpu.memory_space<vmem>>, %arg3: memref<1x10xf32, #tpu.memory_space<vmem>>, %arg4: memref<2x10xf32, #tpu.memory_space<vmem>>) attributes {dimension_semantics = [], scalar_prefetch = 0 : i64, scratch_operands = 0 : i64, tpu.core_type = #tpu.core_type<tc>} {
    %c0 = arith.constant 0 : index
    %c0_0 = arith.constant 0 : index
    %c0_1 = arith.constant 0 : index
    %0 = vector.load %arg0[%c0, %c0_0, %c0_1] : memref<8x2x128xf32, #tpu.memory_space<vmem>>, vector<1x2x128xf32>
    %1 = vector.shape_cast %0 : vector<1x2x128xf32> to vector<2x128xf32>
    %2 = math.tanh %1 : vector<2x128xf32>
    %c1 = arith.constant 1 : index
    %c0_2 = arith.constant 0 : index
    %c0_3 = arith.constant 0 : index
    %3 = vector.load %arg0[%c1, %c0_2, %c0_3] : memref<8x2x128xf32, #tpu.memory_space<vmem>>, vector<1x2x128xf32>
    %4 = vector.shape_cast %3 : vector<1x2x128xf32> to vector<2x128xf32>
    %c0_4 = arith.constant 0 : index
    %c0_5 = arith.constant 0 : index
    %5 = vector.load %arg1[%c0_4, %c0_5] : memref<128x128xf32, #tpu.memory_space<vmem>>, vector<128x128xf32>
    %cst = arith.constant dense<0.000000e+00> : vector<2x128xf32>
    %6 = tpu.matmul %2, %5, %cst {dimension_numbers = #tpu.dot_dimension_numbers<[1], [0], [0], [1], [0, 0, 1, 1], [], []>} : vector<2x128xf32>, vector<128x128xf32>, vector<2x128xf32> -> vector<2x128xf32>
    %7 = arith.addf %4, %6 : vector<2x128xf32>
    %8 = math.tanh %7 : vector<2x128xf32>
    %c2 = arith.constant 2 : index
    %c0_6 = arith.constant 0 : index
    %c0_7 = arith.constant 0 : index
    %9 = vector.load %arg0[%c2, %c0_6, %c0_7] : memref<8x2x128xf32, #tpu.memory_space<vmem>>, vector<1x2x128xf32>
    %10 = vector.shape_cast %9 : vector<1x2x128xf32> to vector<2x128xf32>
    %c0_8 = arith.constant 0 : index
    %c0_9 = arith.constant 0 : index
    %11 = vector.load %arg1[%c0_8, %c0_9] : memref<128x128xf32, #tpu.memory_space<vmem>>, vector<128x128xf32>
    %cst_10 = arith.constant dense<0.000000e+00> : vector<2x128xf32>
    %12 = tpu.matmul %8, %11, %cst_10 {dimension_numbers = #tpu.dot_dimension_numbers<[1], [0], [0], [1], [0, 0, 1, 1], [], []>} : vector<2x128xf32>, vector<128x128xf32>, vector<2x128xf32> -> vector<2x128xf32>
    %13 = arith.addf %10, %12 : vector<2x128xf32>
    %14 = math.tanh %13 : vector<2x128xf32>
    %c3 = arith.constant 3 : index
    %c0_11 = arith.constant 0 : index
    %c0_12 = arith.constant 0 : index
    %15 = vector.load %arg0[%c3, %c0_11, %c0_12] : memref<8x2x128xf32, #tpu.memory_space<vmem>>, vector<1x2x128xf32>
    %16 = vector.shape_cast %15 : vector<1x2x128xf32> to vector<2x128xf32>
    %c0_13 = arith.constant 0 : index
    %c0_14 = arith.constant 0 : index
    %17 = vector.load %arg1[%c0_13, %c0_14] : memref<128x128xf32, #tpu.memory_space<vmem>>, vector<128x128xf32>
    %cst_15 = arith.constant dense<0.000000e+00> : vector<2x128xf32>
    %18 = tpu.matmul %14, %17, %cst_15 {dimension_numbers = #tpu.dot_dimension_numbers<[1], [0], [0], [1], [0, 0, 1, 1], [], []>} : vector<2x128xf32>, vector<128x128xf32>, vector<2x128xf32> -> vector<2x128xf32>
    %19 = arith.addf %16, %18 : vector<2x128xf32>
    %20 = math.tanh %19 : vector<2x128xf32>
    %c4 = arith.constant 4 : index
    %c0_16 = arith.constant 0 : index
    %c0_17 = arith.constant 0 : index
    %21 = vector.load %arg0[%c4, %c0_16, %c0_17] : memref<8x2x128xf32, #tpu.memory_space<vmem>>, vector<1x2x128xf32>
    %22 = vector.shape_cast %21 : vector<1x2x128xf32> to vector<2x128xf32>
    %c0_18 = arith.constant 0 : index
    %c0_19 = arith.constant 0 : index
    %23 = vector.load %arg1[%c0_18, %c0_19] : memref<128x128xf32, #tpu.memory_space<vmem>>, vector<128x128xf32>
    %cst_20 = arith.constant dense<0.000000e+00> : vector<2x128xf32>
    %24 = tpu.matmul %20, %23, %cst_20 {dimension_numbers = #tpu.dot_dimension_numbers<[1], [0], [0], [1], [0, 0, 1, 1], [], []>} : vector<2x128xf32>, vector<128x128xf32>, vector<2x128xf32> -> vector<2x128xf32>
    %25 = arith.addf %22, %24 : vector<2x128xf32>
    %26 = math.tanh %25 : vector<2x128xf32>
    %c5 = arith.constant 5 : index
    %c0_21 = arith.constant 0 : index
    %c0_22 = arith.constant 0 : index
    %27 = vector.load %arg0[%c5, %c0_21, %c0_22] : memref<8x2x128xf32, #tpu.memory_space<vmem>>, vector<1x2x128xf32>
    %28 = vector.shape_cast %27 : vector<1x2x128xf32> to vector<2x128xf32>
    %c0_23 = arith.constant 0 : index
    %c0_24 = arith.constant 0 : index
    %29 = vector.load %arg1[%c0_23, %c0_24] : memref<128x128xf32, #tpu.memory_space<vmem>>, vector<128x128xf32>
    %cst_25 = arith.constant dense<0.000000e+00> : vector<2x128xf32>
    %30 = tpu.matmul %26, %29, %cst_25 {dimension_numbers = #tpu.dot_dimension_numbers<[1], [0], [0], [1], [0, 0, 1, 1], [], []>} : vector<2x128xf32>, vector<128x128xf32>, vector<2x128xf32> -> vector<2x128xf32>
    %31 = arith.addf %28, %30 : vector<2x128xf32>
    %32 = math.tanh %31 : vector<2x128xf32>
    %c6 = arith.constant 6 : index
    %c0_26 = arith.constant 0 : index
    %c0_27 = arith.constant 0 : index
    %33 = vector.load %arg0[%c6, %c0_26, %c0_27] : memref<8x2x128xf32, #tpu.memory_space<vmem>>, vector<1x2x128xf32>
    %34 = vector.shape_cast %33 : vector<1x2x128xf32> to vector<2x128xf32>
    %c0_28 = arith.constant 0 : index
    %c0_29 = arith.constant 0 : index
    %35 = vector.load %arg1[%c0_28, %c0_29] : memref<128x128xf32, #tpu.memory_space<vmem>>, vector<128x128xf32>
    %cst_30 = arith.constant dense<0.000000e+00> : vector<2x128xf32>
    %36 = tpu.matmul %32, %35, %cst_30 {dimension_numbers = #tpu.dot_dimension_numbers<[1], [0], [0], [1], [0, 0, 1, 1], [], []>} : vector<2x128xf32>, vector<128x128xf32>, vector<2x128xf32> -> vector<2x128xf32>
    %37 = arith.addf %34, %36 : vector<2x128xf32>
    %38 = math.tanh %37 : vector<2x128xf32>
    %c7 = arith.constant 7 : index
    %c0_31 = arith.constant 0 : index
    %c0_32 = arith.constant 0 : index
    %39 = vector.load %arg0[%c7, %c0_31, %c0_32] : memref<8x2x128xf32, #tpu.memory_space<vmem>>, vector<1x2x128xf32>
    %40 = vector.shape_cast %39 : vector<1x2x128xf32> to vector<2x128xf32>
    %c0_33 = arith.constant 0 : index
    %c0_34 = arith.constant 0 : index
    %41 = vector.load %arg1[%c0_33, %c0_34] : memref<128x128xf32, #tpu.memory_space<vmem>>, vector<128x128xf32>
    %cst_35 = arith.constant dense<0.000000e+00> : vector<2x128xf32>
    %42 = tpu.matmul %38, %41, %cst_35 {dimension_numbers = #tpu.dot_dimension_numbers<[1], [0], [0], [1], [0, 0, 1, 1], [], []>} : vector<2x128xf32>, vector<128x128xf32>, vector<2x128xf32> -> vector<2x128xf32>
    %43 = arith.addf %40, %42 : vector<2x128xf32>
    %44 = math.tanh %43 : vector<2x128xf32>
    %c0_36 = arith.constant 0 : index
    %c0_37 = arith.constant 0 : index
    %45 = vector.load %arg2[%c0_36, %c0_37] : memref<128x10xf32, #tpu.memory_space<vmem>>, vector<128x10xf32>
    %cst_38 = arith.constant dense<0.000000e+00> : vector<2x10xf32>
    %46 = tpu.matmul %44, %45, %cst_38 {dimension_numbers = #tpu.dot_dimension_numbers<[1], [0], [0], [1], [0, 0, 1, 1], [], []>} : vector<2x128xf32>, vector<128x10xf32>, vector<2x10xf32> -> vector<2x10xf32>
    %c0_39 = arith.constant 0 : index
    %c0_40 = arith.constant 0 : index
    %47 = vector.load %arg3[%c0_39, %c0_40] : memref<1x10xf32, #tpu.memory_space<vmem>>, vector<1x10xf32>
    %48 = vector.broadcast %47 : vector<1x10xf32> to vector<2x10xf32>
    %49 = arith.addf %46, %48 : vector<2x10xf32>
    %c0_41 = arith.constant 0 : index
    %c0_42 = arith.constant 0 : index
    %50 = vector.load %arg4[%c0_41, %c0_42] : memref<2x10xf32, #tpu.memory_space<vmem>>, vector<2x10xf32>
    tpu.vector_store %arg4[%c0_41, %c0_42], %49 {strides = array<i32>} : memref<2x10xf32, #tpu.memory_space<vmem>>, vector<2x10xf32>,
    return
  }
}

</mosaic_0001>

<llo_original>
// kernel: vanilla_rnn_forward.1
$region0: #{vanilla_rnn_forward.1}
  #allocation0 [shape = 'u32[]', space=smem, size = 0x4, offset = 0x4, fixed_abs, tag = 'smem constant byte address 0x4 - core index']
  #allocation1 [shape = 'u32[144,128]{1,0:T(1,128)}', space=vmem, size = 0x12000, scoped, tag = 'internal scratch']
  %s0 = inlined_call_operand.vmem [shape: f32[8,2,128], index: 0, kind: input, shape index: {}]
  %s1 = inlined_call_operand.vmem [shape: f32[128,128], index: 1, kind: input, shape index: {}]
  %s2 = inlined_call_operand.vmem [shape: f32[128,10], index: 2, kind: input, shape index: {}]
  %s3 = inlined_call_operand.vmem [shape: f32[1,10], index: 3, kind: input, shape index: {}]
  %s4 = inlined_call_operand.hbm [shape: f32[2,10], index: 4, kind: output, shape index: {}]
  %s5 = sld [smem:[#allocation0]]
  $region26: #{vanilla_rnn_forward.1} parent=0
    _
  %s7 = ssub.s32 1, %s5
  %s8 = scalar_select 0, %s7, %s5
  $region1: #{vanilla_rnn_forward.1} parent=0
    #allocation2 [shape = 'u8[1024]{0}', space=vmem, size = 0x400, scoped, tag = 'output window, operand 0, single buffered']
    #allocation3 [shape = 's32[1]{0}', space=sflag, size = 0x4, scoped, tag = 'scoped memory for vanilla_rnn_forward.1']
    %9 = vsyncpa [#allocation3], 0
    // Predicated region
    $region2: #{vanilla_rnn_forward.1} parent=1 // pred_check
      _
    $region3: #{vanilla_rnn_forward.1} parent=1 // pred_check_branch
      %11 = sbr.rel (0) target = $region5
    $region4: #{vanilla_rnn_forward.1} parent=1 // pred_region
      _
    $region5: #{vanilla_rnn_forward.1} parent=1 // pred_fallthru
      _
    // Predicated region
    $region6: #{vanilla_rnn_forward.1} parent=1 // pred_check
      _
    $region7: #{vanilla_rnn_forward.1} parent=1 // pred_check_branch
      %13 = sbr.rel (0) target = $region9
    $region8: #{vanilla_rnn_forward.1} parent=1 // pred_region
      _
    $region9: #{vanilla_rnn_forward.1} parent=1 // pred_fallthru
      _
    // Predicated region
    $region10: #{vanilla_rnn_forward.1} parent=1 // pred_check
      _
    $region11: #{vanilla_rnn_forward.1} parent=1 // pred_check_branch
      %15 = sbr.rel (0) target = $region13
    $region12: #{vanilla_rnn_forward.1} parent=1 // pred_region
      _
    $region13: #{vanilla_rnn_forward.1} parent=1 // pred_fallthru
      _
    // Predicated region
    $region14: #{vanilla_rnn_forward.1} parent=1 // pred_check
      _
    $region15: #{vanilla_rnn_forward.1} parent=1 // pred_check_branch
      %17 = sbr.rel (0) target = $region17
    $region16: #{vanilla_rnn_forward.1} parent=1 // pred_region
      _
    $region17: #{vanilla_rnn_forward.1} parent=1 // pred_fallthru
      _
    %v18 = vld [vmem:[%s0] sm:$0x3]
    %v19 = vtanh.pop %v18
    %s20 = scalar_lea.vmem %s0, 2
    %v21 = vld [vmem:[%s20] sm:$0x3]
    %v22 = vld [vmem:[%s1] sm:$0xff]
    %v23 = vld [vmem:[%s1 + $0x8] sm:$0xff]
    %v24 = vld [vmem:[%s1 + $0x10] sm:$0xff]
    %v25 = vld [vmem:[%s1 + $0x18] sm:$0xff]
    %v26 = vld [vmem:[%s1 + $0x20] sm:$0xff]
    %v27 = vld [vmem:[%s1 + $0x28] sm:$0xff]
    %v28 = vld [vmem:[%s1 + $0x30] sm:$0xff]
    %v29 = vld [vmem:[%s1 + $0x38] sm:$0xff]
    %v30 = vld [vmem:[%s1 + $0x40] sm:$0xff]
    %v31 = vld [vmem:[%s1 + $0x48] sm:$0xff]
    %v32 = vld [vmem:[%s1 + $0x50] sm:$0xff]
    %v33 = vld [vmem:[%s1 + $0x58] sm:$0xff]
    %v34 = vld [vmem:[%s1 + $0x60] sm:$0xff]
    %v35 = vld [vmem:[%s1 + $0x68] sm:$0xff]
    %v36 = vld [vmem:[%s1 + $0x70] sm:$0xff]
    %v37 = vld [vmem:[%s1 + $0x78] sm:$0xff]
    %38 = vmatprep.subr.mxu0 0.0
    %39 = vmatpush1.msra.mxu0 %v22
    %40 = vmatprep.subr.mxu0 0.0
    %41 = vmatpush1.msra.mxu0 %v23
    %42 = vmatprep.subr.mxu0 0.0
    %43 = vmatpush1.msra.mxu0 %v24
    %44 = vmatprep.subr.mxu0 0.0
    %45 = vmatpush1.msra.mxu0 %v25
    %46 = vmatprep.subr.mxu0 0.0
    %47 = vmatpush1.msra.mxu0 %v26
    %48 = vmatprep.subr.mxu0 0.0
    %49 = vmatpush1.msra.mxu0 %v27
    %50 = vmatprep.subr.mxu0 0.0
    %51 = vmatpush1.msra.mxu0 %v28
    %52 = vmatprep.subr.mxu0 0.0
    %53 = vmatpush1.msra.mxu0 %v29
    %54 = vmatprep.subr.mxu0 0.0
    %55 = vmatpush1.msra.mxu0 %v30
    %56 = vmatprep.subr.mxu0 0.0
    %57 = vmatpush1.msra.mxu0 %v31
    %58 = vmatprep.subr.mxu0 0.0
    %59 = vmatpush1.msra.mxu0 %v32
    %60 = vmatprep.subr.mxu0 0.0
    %61 = vmatpush1.msra.mxu0 %v33
    %62 = vmatprep.subr.mxu0 0.0
    %63 = vmatpush1.msra.mxu0 %v34
    %64 = vmatprep.subr.mxu0 0.0
    %65 = vmatpush1.msra.mxu0 %v35
    %66 = vmatprep.subr.mxu0 0.0
    %67 = vmatpush1.msra.mxu0 %v36
    %68 = vmatprep.subr.mxu0 0.0
    %69 = vmatpush1.msra.mxu0 %v37
    %70 = vmatprep.subr.mxu0 0.0
    %71 = vmatpush1.msra.mxu0 0.0
    %72 = vmatprep.subr.mxu0 0.0
    %73 = vmatpush1.msra.mxu0 0.0
    %74 = vmatprep.subr.mxu0 0.0
    %75 = vmatpush1.msra.mxu0 0.0
    %76 = vmatprep.subr.mxu0 0.0
    %77 = vmatpush1.msra.mxu0 0.0
    %78 = vmatprep.subr.mxu0 0.0
    %79 = vmatpush1.msra.mxu0 0.0
    %80 = vmatprep.subr.mxu0 0.0
    %81 = vmatpush1.msra.mxu0 0.0
    %82 = vmatprep.subr.mxu0 0.0
    %83 = vmatpush1.msra.mxu0 0.0
    %84 = vmatprep.subr.mxu0 0.0
    %85 = vmatpush1.msra.mxu0 0.0
    %86 = vmatprep.subr.mxu0 0.0
    %87 = vmatpush1.msra.mxu0 0.0
    %88 = vmatprep.subr.mxu0 0.0
    %89 = vmatpush1.msra.mxu0 0.0
    %90 = vmatprep.subr.mxu0 0.0
    %91 = vmatpush1.msra.mxu0 0.0
    %92 = vmatprep.subr.mxu0 0.0
    %93 = vmatpush1.msra.mxu0 0.0
    %94 = vmatprep.subr.mxu0 0.0
    %95 = vmatpush1.msra.mxu0 0.0
    %96 = vmatprep.subr.mxu0 0.0
    %97 = vmatpush1.msra.mxu0 0.0
    %98 = vmatprep.subr.mxu0 0.0
    %99 = vmatpush1.msra.mxu0 0.0
    %100 = vmatprep.subr.mxu0 0.0
    %101 = vmatpush1.msra.mxu0 0.0
    %102 = vmatprep.mubr.f32.mxu0 0.0
    %103 = vmatmul.mubr.f32.gmra.mrb[0].mxu0 %v19
    %v104 = vpop.f32.mrb[0].mxu0
    %v105 = vadd.f32 0.0, %v104
    %v106 = vpop.f32.mrb[0].mxu0
    %107 = vdwg.mxu0
    %v108 = vadd.f32 %v21, %v105
    %v109 = vtanh.pop %v108
    %s110 = scalar_lea.vmem %s0, 4
    %v111 = vld [vmem:[%s110] sm:$0x3]
    %112 = vmatprep.subr.mxu0 0.0
    %113 = vmatpush1.msra.mxu0 %v22
    %114 = vmatprep.subr.mxu0 0.0
    %115 = vmatpush1.msra.mxu0 %v23
    %116 = vmatprep.subr.mxu0 0.0
    %117 = vmatpush1.msra.mxu0 %v24
    %118 = vmatprep.subr.mxu0 0.0
    %119 = vmatpush1.msra.mxu0 %v25
    %120 = vmatprep.subr.mxu0 0.0
    %121 = vmatpush1.msra.mxu0 %v26
    %122 = vmatprep.subr.mxu0 0.0
    %123 = vmatpush1.msra.mxu0 %v27
    %124 = vmatprep.subr.mxu0 0.0
    %125 = vmatpush1.msra.mxu0 %v28
    %126 = vmatprep.subr.mxu0 0.0
    %127 = vmatpush1.msra.mxu0 %v29
    %128 = vmatprep.subr.mxu0 0.0
    %129 = vmatpush1.msra.mxu0 %v30
    %130 = vmatprep.subr.mxu0 0.0
    %131 = vmatpush1.msra.mxu0 %v31
    %132 = vmatprep.subr.mxu0 0.0
    %133 = vmatpush1.msra.mxu0 %v32
    %134 = vmatprep.subr.mxu0 0.0
    %135 = vmatpush1.msra.mxu0 %v33
    %136 = vmatprep.subr.mxu0 0.0
    %137 = vmatpush1.msra.mxu0 %v34
    %138 = vmatprep.subr.mxu0 0.0
    %139 = vmatpush1.msra.mxu0 %v35
    %140 = vmatprep.subr.mxu0 0.0
    %141 = vmatpush1.msra.mxu0 %v36
    %142 = vmatprep.subr.mxu0 0.0
    %143 = vmatpush1.msra.mxu0 %v37
    %144 = vmatprep.subr.mxu0 0.0
    %145 = vmatpush1.msra.mxu0 0.0
    %146 = vmatprep.subr.mxu0 0.0
    %147 = vmatpush1.msra.mxu0 0.0
    %148 = vmatprep.subr.mxu0 0.0
    %149 = vmatpush1.msra.mxu0 0.0
    %150 = vmatprep.subr.mxu0 0.0
    %151 = vmatpush1.msra.mxu0 0.0
    %152 = vmatprep.subr.mxu0 0.0
    %153 = vmatpush1.msra.mxu0 0.0
    %154 = vmatprep.subr.mxu0 0.0
    %155 = vmatpush1.msra.mxu0 0.0
    %156 = vmatprep.subr.mxu0 0.0
    %157 = vmatpush1.msra.mxu0 0.0
    %158 = vmatprep.subr.mxu0 0.0
    %159 = vmatpush1.msra.mxu0 0.0
    %160 = vmatprep.subr.mxu0 0.0
    %161 = vmatpush1.msra.mxu0 0.0
    %162 = vmatprep.subr.mxu0 0.0
    %163 = vmatpush1.msra.mxu0 0.0
    %164 = vmatprep.subr.mxu0 0.0
    %165 = vmatpush1.msra.mxu0 0.0
    %166 = vmatprep.subr.mxu0 0.0
    %167 = vmatpush1.msra.mxu0 0.0
    %168 = vmatprep.subr.mxu0 0.0
    %169 = vmatpush1.msra.mxu0 0.0
    %170 = vmatprep.subr.mxu0 0.0
    %171 = vmatpush1.msra.mxu0 0.0
    %172 = vmatprep.subr.mxu0 0.0
    %173 = vmatpush1.msra.mxu0 0.0
    %174 = vmatprep.subr.mxu0 0.0
    %175 = vmatpush1.msra.mxu0 0.0
    %176 = vmatprep.mubr.f32.mxu0 0.0
    %177 = vmatmul.mubr.f32.gmra.mrb[0].mxu0 %v109
    %v178 = vpop.f32.mrb[0].mxu0
    %v179 = vadd.f32 0.0, %v178
    %v180 = vpop.f32.mrb[0].mxu0
    %181 = vdwg.mxu0
    %v182 = vadd.f32 %v111, %v179
    %v183 = vtanh.pop %v182
    %s184 = scalar_lea.vmem %s0, 6
    %v185 = vld [vmem:[%s184] sm:$0x3]
    %186 = vmatprep.subr.mxu0 0.0
    %187 = vmatpush1.msra.mxu0 %v22
    %188 = vmatprep.subr.mxu0 0.0
    %189 = vmatpush1.msra.mxu0 %v23
    %190 = vmatprep.subr.mxu0 0.0
    %191 = vmatpush1.msra.mxu0 %v24
    %192 = vmatprep.subr.mxu0 0.0
    %193 = vmatpush1.msra.mxu0 %v25
    %194 = vmatprep.subr.mxu0 0.0
    %195 = vmatpush1.msra.mxu0 %v26
    %196 = vmatprep.subr.mxu0 0.0
    %197 = vmatpush1.msra.mxu0 %v27
    %198 = vmatprep.subr.mxu0 0.0
    %199 = vmatpush1.msra.mxu0 %v28
    %200 = vmatprep.subr.mxu0 0.0
    %201 = vmatpush1.msra.mxu0 %v29
    %202 = vmatprep.subr.mxu0 0.0
    %203 = vmatpush1.msra.mxu0 %v30
    %204 = vmatprep.subr.mxu0 0.0
    %205 = vmatpush1.msra.mxu0 %v31
    %206 = vmatprep.subr.mxu0 0.0
    %207 = vmatpush1.msra.mxu0 %v32
    %208 = vmatprep.subr.mxu0 0.0
    %209 = vmatpush1.msra.mxu0 %v33
    %210 = vmatprep.subr.mxu0 0.0
    %211 = vmatpush1.msra.mxu0 %v34
    %212 = vmatprep.subr.mxu0 0.0
    %213 = vmatpush1.msra.mxu0 %v35
    %214 = vmatprep.subr.mxu0 0.0
    %215 = vmatpush1.msra.mxu0 %v36
    %216 = vmatprep.subr.mxu0 0.0
    %217 = vmatpush1.msra.mxu0 %v37
    %218 = vmatprep.subr.mxu0 0.0
    %219 = vmatpush1.msra.mxu0 0.0
    %220 = vmatprep.subr.mxu0 0.0
    %221 = vmatpush1.msra.mxu0 0.0
    %222 = vmatprep.subr.mxu0 0.0
    %223 = vmatpush1.msra.mxu0 0.0
    %224 = vmatprep.subr.mxu0 0.0
    %225 = vmatpush1.msra.mxu0 0.0
    %226 = vmatprep.subr.mxu0 0.0
    %227 = vmatpush1.msra.mxu0 0.0
    %228 = vmatprep.subr.mxu0 0.0
    %229 = vmatpush1.msra.mxu0 0.0
    %230 = vmatprep.subr.mxu0 0.0
    %231 = vmatpush1.msra.mxu0 0.0
    %232 = vmatprep.subr.mxu0 0.0
    %233 = vmatpush1.msra.mxu0 0.0
    %234 = vmatprep.subr.mxu0 0.0
    %235 = vmatpush1.msra.mxu0 0.0
    %236 = vmatprep.subr.mxu0 0.0
    %237 = vmatpush1.msra.mxu0 0.0
    %238 = vmatprep.subr.mxu0 0.0
    %239 = vmatpush1.msra.mxu0 0.0
    %240 = vmatprep.subr.mxu0 0.0
    %241 = vmatpush1.msra.mxu0 0.0
    %242 = vmatprep.subr.mxu0 0.0
    %243 = vmatpush1.msra.mxu0 0.0
    %244 = vmatprep.subr.mxu0 0.0
    %245 = vmatpush1.msra.mxu0 0.0
    %246 = vmatprep.subr.mxu0 0.0
    %247 = vmatpush1.msra.mxu0 0.0
    %248 = vmatprep.subr.mxu0 0.0
    %249 = vmatpush1.msra.mxu0 0.0
    %250 = vmatprep.mubr.f32.mxu0 0.0
    %251 = vmatmul.mubr.f32.gmra.mrb[0].mxu0 %v183
    %v252 = vpop.f32.mrb[0].mxu0
    %v253 = vadd.f32 0.0, %v252
    %v254 = vpop.f32.mrb[0].mxu0
    %255 = vdwg.mxu0
    %v256 = vadd.f32 %v185, %v253
    %v257 = vtanh.pop %v256
    %s258 = scalar_lea.vmem %s0, 8
    %v259 = vld [vmem:[%s258] sm:$0x3]
    %260 = vmatprep.subr.mxu0 0.0
    %261 = vmatpush1.msra.mxu0 %v22
    %262 = vmatprep.subr.mxu0 0.0
    %263 = vmatpush1.msra.mxu0 %v23
    %264 = vmatprep.subr.mxu0 0.0
    %265 = vmatpush1.msra.mxu0 %v24
    %266 = vmatprep.subr.mxu0 0.0
    %267 = vmatpush1.msra.mxu0 %v25
    %268 = vmatprep.subr.mxu0 0.0
    %269 = vmatpush1.msra.mxu0 %v26
    %270 = vmatprep.subr.mxu0 0.0
    %271 = vmatpush1.msra.mxu0 %v27
    %272 = vmatprep.subr.mxu0 0.0
    %273 = vmatpush1.msra.mxu0 %v28
    %274 = vmatprep.subr.mxu0 0.0
    %275 = vmatpush1.msra.mxu0 %v29
    %276 = vmatprep.subr.mxu0 0.0
    %277 = vmatpush1.msra.mxu0 %v30
    %278 = vmatprep.subr.mxu0 0.0
    %279 = vmatpush1.msra.mxu0 %v31
    %280 = vmatprep.subr.mxu0 0.0
    %281 = vmatpush1.msra.mxu0 %v32
    %282 = vmatprep.subr.mxu0 0.0
    %283 = vmatpush1.msra.mxu0 %v33
    %284 = vmatprep.subr.mxu0 0.0
    %285 = vmatpush1.msra.mxu0 %v34
    %286 = vmatprep.subr.mxu0 0.0
    %287 = vmatpush1.msra.mxu0 %v35
    %288 = vmatprep.subr.mxu0 0.0
    %289 = vmatpush1.msra.mxu0 %v36
    %290 = vmatprep.subr.mxu0 0.0
    %291 = vmatpush1.msra.mxu0 %v37
    %292 = vmatprep.subr.mxu0 0.0
    %293 = vmatpush1.msra.mxu0 0.0
    %294 = vmatprep.subr.mxu0 0.0
    %295 = vmatpush1.msra.mxu0 0.0
    %296 = vmatprep.subr.mxu0 0.0
    %297 = vmatpush1.msra.mxu0 0.0
    %298 = vmatprep.subr.mxu0 0.0
    %299 = vmatpush1.msra.mxu0 0.0
    %300 = vmatprep.subr.mxu0 0.0
    %301 = vmatpush1.msra.mxu0 0.0
    %302 = vmatprep.subr.mxu0 0.0
    %303 = vmatpush1.msra.mxu0 0.0
    %304 = vmatprep.subr.mxu0 0.0
    %305 = vmatpush1.msra.mxu0 0.0
    %306 = vmatprep.subr.mxu0 0.0
    %307 = vmatpush1.msra.mxu0 0.0
    %308 = vmatprep.subr.mxu0 0.0
    %309 = vmatpush1.msra.mxu0 0.0
    %310 = vmatprep.subr.mxu0 0.0
    %311 = vmatpush1.msra.mxu0 0.0
    %312 = vmatprep.subr.mxu0 0.0
    %313 = vmatpush1.msra.mxu0 0.0
    %314 = vmatprep.subr.mxu0 0.0
    %315 = vmatpush1.msra.mxu0 0.0
    %316 = vmatprep.subr.mxu0 0.0
    %317 = vmatpush1.msra.mxu0 0.0
    %318 = vmatprep.subr.mxu0 0.0
    %319 = vmatpush1.msra.mxu0 0.0
    %320 = vmatprep.subr.mxu0 0.0
    %321 = vmatpush1.msra.mxu0 0.0
    %322 = vmatprep.subr.mxu0 0.0
    %323 = vmatpush1.msra.mxu0 0.0
    %324 = vmatprep.mubr.f32.mxu0 0.0
    %325 = vmatmul.mubr.f32.gmra.mrb[0].mxu0 %v257
    %v326 = vpop.f32.mrb[0].mxu0
    %v327 = vadd.f32 0.0, %v326
    %v328 = vpop.f32.mrb[0].mxu0
    %329 = vdwg.mxu0
    %v330 = vadd.f32 %v259, %v327
    %v331 = vtanh.pop %v330
    %s332 = scalar_lea.vmem %s0, 10
    %v333 = vld [vmem:[%s332] sm:$0x3]
    %334 = vmatprep.subr.mxu0 0.0
    %335 = vmatpush1.msra.mxu0 %v22
    %336 = vmatprep.subr.mxu0 0.0
    %337 = vmatpush1.msra.mxu0 %v23
    %338 = vmatprep.subr.mxu0 0.0
    %339 = vmatpush1.msra.mxu0 %v24
    %340 = vmatprep.subr.mxu0 0.0
    %341 = vmatpush1.msra.mxu0 %v25
    %342 = vmatprep.subr.mxu0 0.0
    %343 = vmatpush1.msra.mxu0 %v26
    %344 = vmatprep.subr.mxu0 0.0
    %345 = vmatpush1.msra.mxu0 %v27
    %346 = vmatprep.subr.mxu0 0.0
    %347 = vmatpush1.msra.mxu0 %v28
    %348 = vmatprep.subr.mxu0 0.0
    %349 = vmatpush1.msra.mxu0 %v29
    %350 = vmatprep.subr.mxu0 0.0
    %351 = vmatpush1.msra.mxu0 %v30
    %352 = vmatprep.subr.mxu0 0.0
    %353 = vmatpush1.msra.mxu0 %v31
    %354 = vmatprep.subr.mxu0 0.0
    %355 = vmatpush1.msra.mxu0 %v32
    %356 = vmatprep.subr.mxu0 0.0
    %357 = vmatpush1.msra.mxu0 %v33
    %358 = vmatprep.subr.mxu0 0.0
    %359 = vmatpush1.msra.mxu0 %v34
    %360 = vmatprep.subr.mxu0 0.0
    %361 = vmatpush1.msra.mxu0 %v35
    %362 = vmatprep.subr.mxu0 0.0
    %363 = vmatpush1.msra.mxu0 %v36
    %364 = vmatprep.subr.mxu0 0.0
    %365 = vmatpush1.msra.mxu0 %v37
    %366 = vmatprep.subr.mxu0 0.0
    %367 = vmatpush1.msra.mxu0 0.0
    %368 = vmatprep.subr.mxu0 0.0
    %369 = vmatpush1.msra.mxu0 0.0
    %370 = vmatprep.subr.mxu0 0.0
    %371 = vmatpush1.msra.mxu0 0.0
    %372 = vmatprep.subr.mxu0 0.0
    %373 = vmatpush1.msra.mxu0 0.0
    %374 = vmatprep.subr.mxu0 0.0
    %375 = vmatpush1.msra.mxu0 0.0
    %376 = vmatprep.subr.mxu0 0.0
    %377 = vmatpush1.msra.mxu0 0.0
    %378 = vmatprep.subr.mxu0 0.0
    %379 = vmatpush1.msra.mxu0 0.0
    %380 = vmatprep.subr.mxu0 0.0
    %381 = vmatpush1.msra.mxu0 0.0
    %382 = vmatprep.subr.mxu0 0.0
    %383 = vmatpush1.msra.mxu0 0.0
    %384 = vmatprep.subr.mxu0 0.0
    %385 = vmatpush1.msra.mxu0 0.0
    %386 = vmatprep.subr.mxu0 0.0
    %387 = vmatpush1.msra.mxu0 0.0
    %388 = vmatprep.subr.mxu0 0.0
    %389 = vmatpush1.msra.mxu0 0.0
    %390 = vmatprep.subr.mxu0 0.0
    %391 = vmatpush1.msra.mxu0 0.0
    %392 = vmatprep.subr.mxu0 0.0
    %393 = vmatpush1.msra.mxu0 0.0
    %394 = vmatprep.subr.mxu0 0.0
    %395 = vmatpush1.msra.mxu0 0.0
    %396 = vmatprep.subr.mxu0 0.0
    %397 = vmatpush1.msra.mxu0 0.0
    %398 = vmatprep.mubr.f32.mxu0 0.0
    %399 = vmatmul.mubr.f32.gmra.mrb[0].mxu0 %v331
    %v400 = vpop.f32.mrb[0].mxu0
    %v401 = vadd.f32 0.0, %v400
    %v402 = vpop.f32.mrb[0].mxu0
    %403 = vdwg.mxu0
    %v404 = vadd.f32 %v333, %v401
    %v405 = vtanh.pop %v404
    %s406 = scalar_lea.vmem %s0, 12
    %v407 = vld [vmem:[%s406] sm:$0x3]
    %408 = vmatprep.subr.mxu0 0.0
    %409 = vmatpush1.msra.mxu0 %v22
    %410 = vmatprep.subr.mxu0 0.0
    %411 = vmatpush1.msra.mxu0 %v23
    %412 = vmatprep.subr.mxu0 0.0
    %413 = vmatpush1.msra.mxu0 %v24
    %414 = vmatprep.subr.mxu0 0.0
    %415 = vmatpush1.msra.mxu0 %v25
    %416 = vmatprep.subr.mxu0 0.0
    %417 = vmatpush1.msra.mxu0 %v26
    %418 = vmatprep.subr.mxu0 0.0
    %419 = vmatpush1.msra.mxu0 %v27
    %420 = vmatprep.subr.mxu0 0.0
    %421 = vmatpush1.msra.mxu0 %v28
    %422 = vmatprep.subr.mxu0 0.0
    %423 = vmatpush1.msra.mxu0 %v29
    %424 = vmatprep.subr.mxu0 0.0
    %425 = vmatpush1.msra.mxu0 %v30
    %426 = vmatprep.subr.mxu0 0.0
    %427 = vmatpush1.msra.mxu0 %v31
    %428 = vmatprep.subr.mxu0 0.0
    %429 = vmatpush1.msra.mxu0 %v32
    %430 = vmatprep.subr.mxu0 0.0
    %431 = vmatpush1.msra.mxu0 %v33
    %432 = vmatprep.subr.mxu0 0.0
    %433 = vmatpush1.msra.mxu0 %v34
    %434 = vmatprep.subr.mxu0 0.0
    %435 = vmatpush1.msra.mxu0 %v35
    %436 = vmatprep.subr.mxu0 0.0
    %437 = vmatpush1.msra.mxu0 %v36
    %438 = vmatprep.subr.mxu0 0.0
    %439 = vmatpush1.msra.mxu0 %v37
    %440 = vmatprep.subr.mxu0 0.0
    %441 = vmatpush1.msra.mxu0 0.0
    %442 = vmatprep.subr.mxu0 0.0
    %443 = vmatpush1.msra.mxu0 0.0
    %444 = vmatprep.subr.mxu0 0.0
    %445 = vmatpush1.msra.mxu0 0.0
    %446 = vmatprep.subr.mxu0 0.0
    %447 = vmatpush1.msra.mxu0 0.0
    %448 = vmatprep.subr.mxu0 0.0
    %449 = vmatpush1.msra.mxu0 0.0
    %450 = vmatprep.subr.mxu0 0.0
    %451 = vmatpush1.msra.mxu0 0.0
    %452 = vmatprep.subr.mxu0 0.0
    %453 = vmatpush1.msra.mxu0 0.0
    %454 = vmatprep.subr.mxu0 0.0
    %455 = vmatpush1.msra.mxu0 0.0
    %456 = vmatprep.subr.mxu0 0.0
    %457 = vmatpush1.msra.mxu0 0.0
    %458 = vmatprep.subr.mxu0 0.0
    %459 = vmatpush1.msra.mxu0 0.0
    %460 = vmatprep.subr.mxu0 0.0
    %461 = vmatpush1.msra.mxu0 0.0
    %462 = vmatprep.subr.mxu0 0.0
    %463 = vmatpush1.msra.mxu0 0.0
    %464 = vmatprep.subr.mxu0 0.0
    %465 = vmatpush1.msra.mxu0 0.0
    %466 = vmatprep.subr.mxu0 0.0
    %467 = vmatpush1.msra.mxu0 0.0
    %468 = vmatprep.subr.mxu0 0.0
    %469 = vmatpush1.msra.mxu0 0.0
    %470 = vmatprep.subr.mxu0 0.0
    %471 = vmatpush1.msra.mxu0 0.0
    %472 = vmatprep.mubr.f32.mxu0 0.0
    %473 = vmatmul.mubr.f32.gmra.mrb[0].mxu0 %v405
    %v474 = vpop.f32.mrb[0].mxu0
    %v475 = vadd.f32 0.0, %v474
    %v476 = vpop.f32.mrb[0].mxu0
    %477 = vdwg.mxu0
    %v478 = vadd.f32 %v407, %v475
    %v479 = vtanh.pop %v478
    %s480 = scalar_lea.vmem %s0, 14
    %v481 = vld [vmem:[%s480] sm:$0x3]
    %482 = vmatprep.subr.mxu0 0.0
    %483 = vmatpush1.msra.mxu0 %v22
    %484 = vmatprep.subr.mxu0 0.0
    %485 = vmatpush1.msra.mxu0 %v23
    %486 = vmatprep.subr.mxu0 0.0
    %487 = vmatpush1.msra.mxu0 %v24
    %488 = vmatprep.subr.mxu0 0.0
    %489 = vmatpush1.msra.mxu0 %v25
    %490 = vmatprep.subr.mxu0 0.0
    %491 = vmatpush1.msra.mxu0 %v26
    %492 = vmatprep.subr.mxu0 0.0
    %493 = vmatpush1.msra.mxu0 %v27
    %494 = vmatprep.subr.mxu0 0.0
    %495 = vmatpush1.msra.mxu0 %v28
    %496 = vmatprep.subr.mxu0 0.0
    %497 = vmatpush1.msra.mxu0 %v29
    %498 = vmatprep.subr.mxu0 0.0
    %499 = vmatpush1.msra.mxu0 %v30
    %500 = vmatprep.subr.mxu0 0.0
    %501 = vmatpush1.msra.mxu0 %v31
    %502 = vmatprep.subr.mxu0 0.0
    %503 = vmatpush1.msra.mxu0 %v32
    %504 = vmatprep.subr.mxu0 0.0
    %505 = vmatpush1.msra.mxu0 %v33
    %506 = vmatprep.subr.mxu0 0.0
    %507 = vmatpush1.msra.mxu0 %v34
    %508 = vmatprep.subr.mxu0 0.0
    %509 = vmatpush1.msra.mxu0 %v35
    %510 = vmatprep.subr.mxu0 0.0
    %511 = vmatpush1.msra.mxu0 %v36
    %512 = vmatprep.subr.mxu0 0.0
    %513 = vmatpush1.msra.mxu0 %v37
    %514 = vmatprep.subr.mxu0 0.0
    %515 = vmatpush1.msra.mxu0 0.0
    %516 = vmatprep.subr.mxu0 0.0
    %517 = vmatpush1.msra.mxu0 0.0
    %518 = vmatprep.subr.mxu0 0.0
    %519 = vmatpush1.msra.mxu0 0.0
    %520 = vmatprep.subr.mxu0 0.0
    %521 = vmatpush1.msra.mxu0 0.0
    %522 = vmatprep.subr.mxu0 0.0
    %523 = vmatpush1.msra.mxu0 0.0
    %524 = vmatprep.subr.mxu0 0.0
    %525 = vmatpush1.msra.mxu0 0.0
    %526 = vmatprep.subr.mxu0 0.0
    %527 = vmatpush1.msra.mxu0 0.0
    %528 = vmatprep.subr.mxu0 0.0
    %529 = vmatpush1.msra.mxu0 0.0
    %530 = vmatprep.subr.mxu0 0.0
    %531 = vmatpush1.msra.mxu0 0.0
    %532 = vmatprep.subr.mxu0 0.0
    %533 = vmatpush1.msra.mxu0 0.0
    %534 = vmatprep.subr.mxu0 0.0
    %535 = vmatpush1.msra.mxu0 0.0
    %536 = vmatprep.subr.mxu0 0.0
    %537 = vmatpush1.msra.mxu0 0.0
    %538 = vmatprep.subr.mxu0 0.0
    %539 = vmatpush1.msra.mxu0 0.0
    %540 = vmatprep.subr.mxu0 0.0
    %541 = vmatpush1.msra.mxu0 0.0
    %542 = vmatprep.subr.mxu0 0.0
    %543 = vmatpush1.msra.mxu0 0.0
    %544 = vmatprep.subr.mxu0 0.0
    %545 = vmatpush1.msra.mxu0 0.0
    %546 = vmatprep.mubr.f32.mxu0 0.0
    %547 = vmatmul.mubr.f32.gmra.mrb[0].mxu0 %v479
    %v548 = vpop.f32.mrb[0].mxu0
    %v549 = vadd.f32 0.0, %v548
    %v550 = vpop.f32.mrb[0].mxu0
    %551 = vdwg.mxu0
    %v552 = vadd.f32 %v481, %v549
    %v553 = vtanh.pop %v552
    %v554 = vld [vmem:[%s2] sm:$0xff]
    %v555 = vld [vmem:[%s2 + $0x8] sm:$0xff]
    %v556 = vld [vmem:[%s2 + $0x10] sm:$0xff]
    %v557 = vld [vmem:[%s2 + $0x18] sm:$0xff]
    %v558 = vld [vmem:[%s2 + $0x20] sm:$0xff]
    %v559 = vld [vmem:[%s2 + $0x28] sm:$0xff]
    %v560 = vld [vmem:[%s2 + $0x30] sm:$0xff]
    %v561 = vld [vmem:[%s2 + $0x38] sm:$0xff]
    %v562 = vld [vmem:[%s2 + $0x40] sm:$0xff]
    %v563 = vld [vmem:[%s2 + $0x48] sm:$0xff]
    %v564 = vld [vmem:[%s2 + $0x50] sm:$0xff]
    %v565 = vld [vmem:[%s2 + $0x58] sm:$0xff]
    %v566 = vld [vmem:[%s2 + $0x60] sm:$0xff]
    %v567 = vld [vmem:[%s2 + $0x68] sm:$0xff]
    %v568 = vld [vmem:[%s2 + $0x70] sm:$0xff]
    %v569 = vld [vmem:[%s2 + $0x78] sm:$0xff]
    %v570 = vld [vmem:[%s3] sm:$0x1]
    %v572 = vlaneseq
    %v573 = vshrl.u32 %v572, 7
    %v574 = vsub.s32 0, %v573
    %v575 = vrot.slane %v570, %v574
    %577 = vmatprep.subr.mxu0 0.0
    %578 = vmatpush1.msra.mxu0 %v554
    %579 = vmatprep.subr.mxu0 0.0
    %580 = vmatpush1.msra.mxu0 %v555
    %581 = vmatprep.subr.mxu0 0.0
    %582 = vmatpush1.msra.mxu0 %v556
    %583 = vmatprep.subr.mxu0 0.0
    %584 = vmatpush1.msra.mxu0 %v557
    %585 = vmatprep.subr.mxu0 0.0
    %586 = vmatpush1.msra.mxu0 %v558
    %587 = vmatprep.subr.mxu0 0.0
    %588 = vmatpush1.msra.mxu0 %v559
    %589 = vmatprep.subr.mxu0 0.0
    %590 = vmatpush1.msra.mxu0 %v560
    %591 = vmatprep.subr.mxu0 0.0
    %592 = vmatpush1.msra.mxu0 %v561
    %593 = vmatprep.subr.mxu0 0.0
    %594 = vmatpush1.msra.mxu0 %v562
    %595 = vmatprep.subr.mxu0 0.0
    %596 = vmatpush1.msra.mxu0 %v563
    %597 = vmatprep.subr.mxu0 0.0
    %598 = vmatpush1.msra.mxu0 %v564
    %599 = vmatprep.subr.mxu0 0.0
    %600 = vmatpush1.msra.mxu0 %v565
    %601 = vmatprep.subr.mxu0 0.0
    %602 = vmatpush1.msra.mxu0 %v566
    %603 = vmatprep.subr.mxu0 0.0
    %604 = vmatpush1.msra.mxu0 %v567
    %605 = vmatprep.subr.mxu0 0.0
    %606 = vmatpush1.msra.mxu0 %v568
    %607 = vmatprep.subr.mxu0 0.0
    %608 = vmatpush1.msra.mxu0 %v569
    %609 = vmatprep.subr.mxu0 0.0
    %610 = vmatpush1.msra.mxu0 0.0
    %611 = vmatprep.subr.mxu0 0.0
    %612 = vmatpush1.msra.mxu0 0.0
    %613 = vmatprep.subr.mxu0 0.0
    %614 = vmatpush1.msra.mxu0 0.0
    %615 = vmatprep.subr.mxu0 0.0
    %616 = vmatpush1.msra.mxu0 0.0
    %617 = vmatprep.subr.mxu0 0.0
    %618 = vmatpush1.msra.mxu0 0.0
    %619 = vmatprep.subr.mxu0 0.0
    %620 = vmatpush1.msra.mxu0 0.0
    %621 = vmatprep.subr.mxu0 0.0
    %622 = vmatpush1.msra.mxu0 0.0
    %623 = vmatprep.subr.mxu0 0.0
    %624 = vmatpush1.msra.mxu0 0.0
    %625 = vmatprep.subr.mxu0 0.0
    %626 = vmatpush1.msra.mxu0 0.0
    %627 = vmatprep.subr.mxu0 0.0
    %628 = vmatpush1.msra.mxu0 0.0
    %629 = vmatprep.subr.mxu0 0.0
    %630 = vmatpush1.msra.mxu0 0.0
    %631 = vmatprep.subr.mxu0 0.0
    %632 = vmatpush1.msra.mxu0 0.0
    %633 = vmatprep.subr.mxu0 0.0
    %634 = vmatpush1.msra.mxu0 0.0
    %635 = vmatprep.subr.mxu0 0.0
    %636 = vmatpush1.msra.mxu0 0.0
    %637 = vmatprep.subr.mxu0 0.0
    %638 = vmatpush1.msra.mxu0 0.0
    %639 = vmatprep.subr.mxu0 0.0
    %640 = vmatpush1.msra.mxu0 0.0
    %641 = vmatprep.mubr.f32.mxu0 0.0
    %642 = vmatmul.mubr.f32.gmra.mrb[0].mxu0 %v553
    %v643 = vpop.f32.mrb[0].mxu0
    %v644 = vadd.f32 %v575, %v643
    %v645 = vpop.f32.mrb[0].mxu0
    %646 = vdwg.mxu0
    %vm647 = vcmask 74752
    %648 = vst.msk [vmem:[#allocation2] sm:$0x3] %vm647, %v644
    // Predicated region
    $region18: #{vanilla_rnn_forward.1} parent=1 // pred_check
      _
    $region19: #{vanilla_rnn_forward.1} parent=1 // pred_check_branch
      %650 = sbr.rel (0) target = $region21
    $region20: #{vanilla_rnn_forward.1} parent=1 // pred_region
      %s652 = ssub.s32 32, 32
      %653 = vsyncadd [#allocation3], %s652
      %s655 = sshll.u32 [#allocation2], 4
      %s656 = int_to_ptr.vmem [resolvable:$true] %s655
      %658 = dma.vmem_to_hbm [thread:$0]  %s656, 32, %s4, [#allocation3]
    $region21: #{vanilla_rnn_forward.1} parent=1 // pred_fallthru
      _
    // Predicated region
    $region22: #{vanilla_rnn_forward.1} parent=1 // pred_check
      _
    $region23: #{vanilla_rnn_forward.1} parent=1 // pred_check_branch
      %660 = sbr.rel (0) target = $region25
    $region24: #{vanilla_rnn_forward.1} parent=1 // pred_region
      %661 = dma.done [#allocation3], 32
    $region25: #{vanilla_rnn_forward.1} parent=1 // pred_fallthru
      _
    %662 = vsyncpa [#allocation3], 1

</llo_original>
